<compile_context>
chip_gen: v5e
topology: v5e:2x2
jax: 0.10.0
libtpu: 0.0.40
codegen_flags: <defaults>
</compile_context>

<pallas_src>
import jax
import jax.numpy as jnp
from jax.experimental import pallas as pl
from jax.experimental.pallas import tpu as pltpu


def spatial_decoder_kernel(coord_ref, zT_ref, wcT_ref, bcT_ref, wlT_ref,
                           wo_ref, bo_ref, y_ref):
    # coord_ref: (2, Nt)  channel-major pixel coordinates (current N-tile)
    # zT_ref   : (L, B)   latent codes, channel-major (full array)
    # wcT_ref  : (H, 2)   coord_linear weight, transposed
    # bcT_ref  : (H, 1)   coord_linear bias (column)
    # wlT_ref  : (H, L)   latent_linear weight (no bias), transposed
    # wo_ref   : (H, 1)   output Linear(H, 1) weight (column)
    # bo_ref   : (1, 1)   output bias, SMEM scalar
    # y_ref    : (B, Nt)  sigmoid(logits), lane-dense tile
    L, B = zT_ref.shape
    H = wcT_ref.shape[0]
    Nt = coord_ref.shape[1]

    coords = coord_ref[...]                                   # (2, Nt)
    wcT = wcT_ref[...]                                        # (H, 2)

    # h_x = coord_linear(coords) (bias folded into hz below): K=2 contraction
    # -> two VPU broadcast MACs. Identical for every batch element.
    h_x = (wcT[:, 0:1] * coords[0:1, :]
           + wcT[:, 1:2] * coords[1:2, :])                    # (H, Nt)

    # Per-batch hidden bias hz[:, b] = W_latent @ z_b + b_coord, channel-major.
    # K = L (tiny) -> unrolled VPU multiply-adds, no MXU.
    zT = zT_ref[...]                                          # (L, B)
    wlT = wlT_ref[...]                                        # (H, L)
    hz = jnp.broadcast_to(bcT_ref[...], (H, B))               # (H, B)
    for l in range(L):                                        # L tiny & static
        hz = hz + wlT[:, l:l + 1] * zT[l:l + 1, :]            # (H, B)

    # Hoisted loop-invariant lane-broadcast of the output weight.
    wo_b = jnp.broadcast_to(wo_ref[...], (H, Nt))             # (H, Nt)
    bo = bo_ref[0, 0]                                         # scalar from SMEM

    rows = []
    for b in range(B):                                        # small static batch unroll
        h = h_x + hz[:, b:b + 1]                              # (H, Nt)
        h = jnp.maximum(h, 0.01 * h)                          # LeakyReLU(0.01), max-form
        # Linear(H, 1): sublane (XLU) reduce over H, result stays lane-dense.
        logits = jnp.sum(h * wo_b, axis=0, keepdims=True) + bo  # (1, Nt)
        # sigmoid = 1 / (1 + exp(-x)); exp + reciprocal ride the EUP slot.
        rows.append(pl.reciprocal(1.0 + jnp.exp(-logits), approx=False))
    # Single dense (B, Nt) store instead of B masked single-row stores.
    y_ref[...] = jnp.concatenate(rows, axis=0)


def spatial_decoder(coords, z, params, data_dim):
    """coords: (N, 2) pixel grid shared across the batch (spatial-VAE usage),
    z: (B, latent_dim). Returns (B, *data_dim), matching the PyTorch forward."""
    N = coords.shape[0]
    B, L = z.shape
    H = params["wc"].shape[1]

    # Pad N up to a multiple of 128 so every tile / store is lane-dense.
    N_pad = ((N + 127) // 128) * 128

    # One-time tiny transposes/reshapes to the channel-major kernel layout.
    coordsT = jnp.asarray(coords, jnp.float32).T              # (2, N)
    if N_pad != N:
        coordsT = jnp.pad(coordsT, ((0, 0), (0, N_pad - N)))
    zT = jnp.asarray(z, jnp.float32).T                        # (L, B)
    wcT = params["wc"].T                                      # (H, 2)
    bcT = params["bc"].reshape(H, 1)                          # (H, 1)
    wlT = params["wl"].T                                      # (H, L)
    woC = params["wo"].reshape(H, 1)                          # (H, 1)
    bo = params["bo"].reshape(1, 1)                           # (1, 1)

    # Lane-dense N tile: big enough to amortize per-step overhead (>=512 when
    # possible), small enough to be safe on v7x's 64 MiB / v5e's 16 MiB-scoped
    # VMEM (max working set per step: (H+2+B) * 4096 * 4B * 2 buffers ~ 1 MiB).
    tile_n = N_pad
    for cand in (4096, 2048, 1024, 512, 256, 128):
        if N_pad % cand == 0:
            tile_n = cand
            break

    vmem_full = pl.BlockSpec(memory_space=pltpu.MemorySpace.VMEM)
    smem_full = pl.BlockSpec(memory_space=pltpu.MemorySpace.SMEM)

    y = pl.pallas_call(
        spatial_decoder_kernel,
        out_shape=jax.ShapeDtypeStruct((B, N_pad), jnp.float32),
        grid=(N_pad // tile_n,),
        in_specs=[
            pl.BlockSpec((2, tile_n), lambda i: (0, i)),      # coords: tiled over N
            vmem_full,                                        # zT   (full)
            vmem_full,                                        # wcT  (full)
            vmem_full,                                        # bcT  (full)
            vmem_full,                                        # wlT  (full)
            vmem_full,                                        # wo   (full)
            smem_full,                                        # bo   (SMEM scalar)
        ],
        out_specs=pl.BlockSpec((B, tile_n), lambda i: (0, i)),
        compiler_params=pltpu.CompilerParams(
            dimension_semantics=("parallel",)),               # lets v7x use both TCs
    )(coordsT, zT, wcT, bcT, wlT, woC, bo)

    if N_pad != N:
        y = y[:, :N]
    return y.reshape((B,) + tuple(data_dim))


def reference(coords, z, params, data_dim):
    """Plain-JAX replica of the PyTorch forward (for verification)."""
    B = z.shape[0]
    h_x = coords @ params["wc"] + params["bc"]                # (N, H)
    h_z = z @ params["wl"]                                    # (B, H)
    h = h_x[None, :, :] + h_z[:, None, :]                     # (B, N, H)
    h = jnp.where(h >= 0, h, 0.01 * h)                        # LeakyReLU(0.01)
    y = h @ params["wo"][:, None] + params["bo"]              # (B, N, 1)
    y = jax.nn.sigmoid(y)
    return y.reshape((B,) + tuple(data_dim))


if __name__ == "__main__":
    B = 2
    data_dim = (16, 16)            # output image shape
    N = data_dim[0] * data_dim[1]  # 256 pixel locations (= 2 * 128 lanes)
    latent_dim = 4
    hidden_dim = 32

    key = jax.random.PRNGKey(0)
    k_wc, k_bc, k_wl, k_wo, k_bo, k_z = jax.random.split(key, 6)

    # Deterministic parameter init (Linear-like scaling).
    params = {
        "wc": jax.random.normal(k_wc, (2, hidden_dim), jnp.float32) * 0.5,
        "bc": jax.random.normal(k_bc, (hidden_dim,), jnp.float32) * 0.1,
        "wl": jax.random.normal(k_wl, (latent_dim, hidden_dim), jnp.float32) * 0.3,
        "wo": jax.random.normal(k_wo, (hidden_dim,), jnp.float32) * 0.2,
        "bo": jax.random.normal(k_bo, (), jnp.float32) * 0.1,
    }

    # Coordinate grid in [-1, 1]^2, shared by every batch element (spatial-VAE).
    ys = jnp.linspace(-1.0, 1.0, data_dim[0])
    xs = jnp.linspace(-1.0, 1.0, data_dim[1])
    gy, gx = jnp.meshgrid(ys, xs, indexing="ij")
    coords = jnp.stack([gy.ravel(), gx.ravel()], axis=-1).astype(jnp.float32)  # (N, 2)

    z = jax.random.normal(k_z, (B, latent_dim), jnp.float32)

    out = spatial_decoder(coords, z, params, data_dim)
    out = jax.block_until_ready(out)

    ref = reference(coords, z, params, data_dim)
    assert out.shape == (B,) + data_dim
    assert jnp.allclose(out, ref, atol=1e-5, rtol=1e-5)

    print("KERNEL_OK")
</pallas_src>

<mosaic_0001>
module attributes {stable_mosaic.version = 11 : i64} {
  func.func @spatial_decoder_kernel(%arg0: i32, %arg1: memref<2x256xf32, #tpu.memory_space<vmem>>, %arg2: memref<4x2xf32, #tpu.memory_space<vmem>>, %arg3: memref<32x2xf32, #tpu.memory_space<vmem>>, %arg4: memref<32x1xf32, #tpu.memory_space<vmem>>, %arg5: memref<32x4xf32, #tpu.memory_space<vmem>>, %arg6: memref<32x1xf32, #tpu.memory_space<vmem>>, %arg7: memref<1x1xf32, #tpu.memory_space<smem>>, %arg8: memref<2x256xf32, #tpu.memory_space<vmem>>) attributes {dimension_semantics = [#tpu.dimension_semantics<parallel>], iteration_bounds = array<i64: 1>, scalar_prefetch = 0 : i64, scratch_operands = 0 : i64, tpu.core_type = #tpu.core_type<tc>, window_params = [{transform_indices = @transform_0, window_bounds = array<i64: 2, 256>}, {pipeline_mode = #tpu.pipeline_mode<synchronous>, transform_indices = @transform_1, window_bounds = array<i64: 4, 2>}, {pipeline_mode = #tpu.pipeline_mode<synchronous>, transform_indices = @transform_2, window_bounds = array<i64: 32, 2>}, {pipeline_mode = #tpu.pipeline_mode<synchronous>, transform_indices = @transform_3, window_bounds = array<i64: 32, 1>}, {pipeline_mode = #tpu.pipeline_mode<synchronous>, transform_indices = @transform_4, window_bounds = array<i64: 32, 4>}, {pipeline_mode = #tpu.pipeline_mode<synchronous>, transform_indices = @transform_5, window_bounds = array<i64: 32, 1>}, {transform_indices = @transform_6, window_bounds = array<i64: 1, 1>}, {transform_indices = @transform_7, window_bounds = array<i64: 2, 256>}]} {
    %c0 = arith.constant 0 : index
    %c0_0 = arith.constant 0 : index
    %0 = vector.load %arg1[%c0, %c0_0] : memref<2x256xf32, #tpu.memory_space<vmem>>, vector<2x256xf32>
    %c0_1 = arith.constant 0 : index
    %c0_2 = arith.constant 0 : index
    %1 = vector.load %arg3[%c0_1, %c0_2] : memref<32x2xf32, #tpu.memory_space<vmem>>, vector<32x2xf32>
    %2 = vector.extract_strided_slice %1 {offsets = [0, 0], sizes = [32, 1], strides = [1, 1]} : vector<32x2xf32> to vector<32x1xf32>
    %3 = vector.extract_strided_slice %0 {offsets = [0, 0], sizes = [1, 256], strides = [1, 1]} : vector<2x256xf32> to vector<1x256xf32>
    %4 = vector.broadcast %2 : vector<32x1xf32> to vector<32x256xf32>
    %5 = vector.broadcast %3 : vector<1x256xf32> to vector<32x256xf32>
    %6 = arith.mulf %4, %5 : vector<32x256xf32>
    %7 = vector.extract_strided_slice %1 {offsets = [0, 1], sizes = [32, 1], strides = [1, 1]} : vector<32x2xf32> to vector<32x1xf32>
    %8 = vector.extract_strided_slice %0 {offsets = [1, 0], sizes = [1, 256], strides = [1, 1]} : vector<2x256xf32> to vector<1x256xf32>
    %9 = vector.broadcast %7 : vector<32x1xf32> to vector<32x256xf32>
    %10 = vector.broadcast %8 : vector<1x256xf32> to vector<32x256xf32>
    %11 = arith.mulf %9, %10 : vector<32x256xf32>
    %12 = arith.addf %6, %11 : vector<32x256xf32>
    %c0_3 = arith.constant 0 : index
    %c0_4 = arith.constant 0 : index
    %13 = vector.load %arg2[%c0_3, %c0_4] : memref<4x2xf32, #tpu.memory_space<vmem>>, vector<4x2xf32>
    %c0_5 = arith.constant 0 : index
    %c0_6 = arith.constant 0 : index
    %14 = vector.load %arg5[%c0_5, %c0_6] : memref<32x4xf32, #tpu.memory_space<vmem>>, vector<32x4xf32>
    %c0_7 = arith.constant 0 : index
    %c0_8 = arith.constant 0 : index
    %15 = vector.load %arg4[%c0_7, %c0_8] : memref<32x1xf32, #tpu.memory_space<vmem>>, vector<32x1xf32>
    %16 = vector.shape_cast %15 : vector<32x1xf32> to vector<32x1xf32>
    %17 = vector.broadcast %16 : vector<32x1xf32> to vector<32x2xf32>
    %18 = vector.extract_strided_slice %14 {offsets = [0, 0], sizes = [32, 1], strides = [1, 1]} : vector<32x4xf32> to vector<32x1xf32>
    %19 = vector.extract_strided_slice %13 {offsets = [0, 0], sizes = [1, 2], strides = [1, 1]} : vector<4x2xf32> to vector<1x2xf32>
    %20 = vector.broadcast %18 : vector<32x1xf32> to vector<32x2xf32>
    %21 = vector.broadcast %19 : vector<1x2xf32> to vector<32x2xf32>
    %22 = arith.mulf %20, %21 : vector<32x2xf32>
    %23 = arith.addf %17, %22 : vector<32x2xf32>
    %24 = vector.extract_strided_slice %14 {offsets = [0, 1], sizes = [32, 1], strides = [1, 1]} : vector<32x4xf32> to vector<32x1xf32>
    %25 = vector.extract_strided_slice %13 {offsets = [1, 0], sizes = [1, 2], strides = [1, 1]} : vector<4x2xf32> to vector<1x2xf32>
    %26 = vector.broadcast %24 : vector<32x1xf32> to vector<32x2xf32>
    %27 = vector.broadcast %25 : vector<1x2xf32> to vector<32x2xf32>
    %28 = arith.mulf %26, %27 : vector<32x2xf32>
    %29 = arith.addf %23, %28 : vector<32x2xf32>
    %30 = vector.extract_strided_slice %14 {offsets = [0, 2], sizes = [32, 1], strides = [1, 1]} : vector<32x4xf32> to vector<32x1xf32>
    %31 = vector.extract_strided_slice %13 {offsets = [2, 0], sizes = [1, 2], strides = [1, 1]} : vector<4x2xf32> to vector<1x2xf32>
    %32 = vector.broadcast %30 : vector<32x1xf32> to vector<32x2xf32>
    %33 = vector.broadcast %31 : vector<1x2xf32> to vector<32x2xf32>
    %34 = arith.mulf %32, %33 : vector<32x2xf32>
    %35 = arith.addf %29, %34 : vector<32x2xf32>
    %36 = vector.extract_strided_slice %14 {offsets = [0, 3], sizes = [32, 1], strides = [1, 1]} : vector<32x4xf32> to vector<32x1xf32>
    %37 = vector.extract_strided_slice %13 {offsets = [3, 0], sizes = [1, 2], strides = [1, 1]} : vector<4x2xf32> to vector<1x2xf32>
    %38 = vector.broadcast %36 : vector<32x1xf32> to vector<32x2xf32>
    %39 = vector.broadcast %37 : vector<1x2xf32> to vector<32x2xf32>
    %40 = arith.mulf %38, %39 : vector<32x2xf32>
    %41 = arith.addf %35, %40 : vector<32x2xf32>
    %c0_9 = arith.constant 0 : index
    %c0_10 = arith.constant 0 : index
    %42 = vector.load %arg6[%c0_9, %c0_10] : memref<32x1xf32, #tpu.memory_space<vmem>>, vector<32x1xf32>
    %43 = vector.shape_cast %42 : vector<32x1xf32> to vector<32x1xf32>
    %44 = vector.broadcast %43 : vector<32x1xf32> to vector<32x256xf32>
    %c0_11 = arith.constant 0 : index
    %c0_12 = arith.constant 0 : index
    %45 = memref.load %arg7[%c0_11, %c0_12] : memref<1x1xf32, #tpu.memory_space<smem>>
    %46 = vector.extract_strided_slice %41 {offsets = [0, 0], sizes = [32, 1], strides = [1, 1]} : vector<32x2xf32> to vector<32x1xf32>
    %47 = vector.broadcast %46 : vector<32x1xf32> to vector<32x256xf32>
    %48 = arith.addf %12, %47 : vector<32x256xf32>
    %cst = arith.constant 0.00999999977 : f32
    %49 = vector.broadcast %cst : f32 to vector<32x256xf32>
    %50 = arith.mulf %49, %48 : vector<32x256xf32>
    %51 = arith.maximumf %48, %50 : vector<32x256xf32>
    %52 = arith.mulf %51, %44 : vector<32x256xf32>
    %cst_13 = arith.constant dense<0.000000e+00> : vector<256xf32>
    %53 = vector.multi_reduction <add>, %52, %cst_13 [0] : vector<32x256xf32> to vector<256xf32>
    %54 = vector.shape_cast %53 : vector<256xf32> to vector<1x256xf32>
    %55 = vector.broadcast %45 : f32 to vector<1x256xf32>
    %56 = arith.addf %54, %55 : vector<1x256xf32>
    %cst_14 = arith.constant 0.000000e+00 : f32
    %57 = vector.broadcast %cst_14 : f32 to vector<1x256xf32>
    %58 = arith.subf %57, %56 : vector<1x256xf32>
    %59 = math.exp %58 : vector<1x256xf32>
    %cst_15 = arith.constant 1.000000e+00 : f32
    %60 = vector.broadcast %cst_15 : f32 to vector<1x256xf32>
    %61 = arith.addf %60, %59 : vector<1x256xf32>
    %62 = tpu.reciprocal %61 : vector<1x256xf32> -> vector<1x256xf32>
    %63 = vector.extract_strided_slice %41 {offsets = [0, 1], sizes = [32, 1], strides = [1, 1]} : vector<32x2xf32> to vector<32x1xf32>
    %64 = vector.broadcast %63 : vector<32x1xf32> to vector<32x256xf32>
    %65 = arith.addf %12, %64 : vector<32x256xf32>
    %cst_16 = arith.constant 0.00999999977 : f32
    %66 = vector.broadcast %cst_16 : f32 to vector<32x256xf32>
    %67 = arith.mulf %66, %65 : vector<32x256xf32>
    %68 = arith.maximumf %65, %67 : vector<32x256xf32>
    %69 = arith.mulf %68, %44 : vector<32x256xf32>
    %cst_17 = arith.constant dense<0.000000e+00> : vector<256xf32>
    %70 = vector.multi_reduction <add>, %69, %cst_17 [0] : vector<32x256xf32> to vector<256xf32>
    %71 = vector.shape_cast %70 : vector<256xf32> to vector<1x256xf32>
    %72 = vector.broadcast %45 : f32 to vector<1x256xf32>
    %73 = arith.addf %71, %72 : vector<1x256xf32>
    %cst_18 = arith.constant 0.000000e+00 : f32
    %74 = vector.broadcast %cst_18 : f32 to vector<1x256xf32>
    %75 = arith.subf %74, %73 : vector<1x256xf32>
    %76 = math.exp %75 : vector<1x256xf32>
    %cst_19 = arith.constant 1.000000e+00 : f32
    %77 = vector.broadcast %cst_19 : f32 to vector<1x256xf32>
    %78 = arith.addf %77, %76 : vector<1x256xf32>
    %79 = tpu.reciprocal %78 : vector<1x256xf32> -> vector<1x256xf32>
    %80 = tpu.concatenate %62, %79 in 0 : vector<1x256xf32>, vector<1x256xf32> -> vector<2x256xf32>
    %c0_20 = arith.constant 0 : index
    %c0_21 = arith.constant 0 : index
    %81 = vector.load %arg8[%c0_20, %c0_21] : memref<2x256xf32, #tpu.memory_space<vmem>>, vector<2x256xf32>
    tpu.vector_store %arg8[%c0_20, %c0_21], %80 {strides = array<i32>} : memref<2x256xf32, #tpu.memory_space<vmem>>, vector<2x256xf32>,
    return
  }
  func.func @transform_0(%arg0: i32) -> (i32, i32) {
    %c0_i32 = arith.constant 0 : i32
    %c0_i32_0 = arith.constant 0 : i32
    return %c0_i32, %arg0 : i32, i32
  }
  func.func @transform_1(%arg0: i32) -> (i32, i32) {
    %c0_i32 = arith.constant 0 : i32
    %c0_i32_0 = arith.constant 0 : i32
    %c0_i32_1 = arith.constant 0 : i32
    return %c0_i32, %c0_i32_0 : i32, i32
  }
  func.func @transform_2(%arg0: i32) -> (i32, i32) {
    %c0_i32 = arith.constant 0 : i32
    %c0_i32_0 = arith.constant 0 : i32
    %c0_i32_1 = arith.constant 0 : i32
    return %c0_i32, %c0_i32_0 : i32, i32
  }
  func.func @transform_3(%arg0: i32) -> (i32, i32) {
    %c0_i32 = arith.constant 0 : i32
    %c0_i32_0 = arith.constant 0 : i32
    %c0_i32_1 = arith.constant 0 : i32
    return %c0_i32, %c0_i32_0 : i32, i32
  }
  func.func @transform_4(%arg0: i32) -> (i32, i32) {
    %c0_i32 = arith.constant 0 : i32
    %c0_i32_0 = arith.constant 0 : i32
    %c0_i32_1 = arith.constant 0 : i32
    return %c0_i32, %c0_i32_0 : i32, i32
  }
  func.func @transform_5(%arg0: i32) -> (i32, i32) {
    %c0_i32 = arith.constant 0 : i32
    %c0_i32_0 = arith.constant 0 : i32
    %c0_i32_1 = arith.constant 0 : i32
    return %c0_i32, %c0_i32_0 : i32, i32
  }
  func.func @transform_6(%arg0: i32) -> (i32, i32) {
    %c0_i32 = arith.constant 0 : i32
    %c0_i32_0 = arith.constant 0 : i32
    %c0_i32_1 = arith.constant 0 : i32
    return %c0_i32, %c0_i32_0 : i32, i32
  }
  func.func @transform_7(%arg0: i32) -> (i32, i32) {
    %c0_i32 = arith.constant 0 : i32
    %c0_i32_0 = arith.constant 0 : i32
    return %c0_i32, %arg0 : i32, i32
  }
}

</mosaic_0001>

<llo_original>
// kernel: tpu_custom_call.1
$region0: #{tpu_custom_call.1}
  #allocation0 [shape = 'u32[]', space=smem, size = 0x4, offset = 0x4, fixed_abs, tag = 'smem constant byte address 0x4 - core index']
  #allocation1 [shape = 'u32[72,128]{1,0:T(1,128)}', space=vmem, size = 0x9000, scoped, tag = 'internal scratch']
  #allocation2 [shape = 'f32[1,1]{1,0:T(1,128)S(6)}', space=smem, size = 0x200, scoped, tag = 'scoped memory for tpu_custom_call.1']
  %s0 = inlined_call_operand.vmem [shape: f32[2,256], index: 0, kind: input, shape index: {}]
  %s1 = inlined_call_operand.vmem [shape: f32[4,2], index: 1, kind: input, shape index: {}]
  %s2 = inlined_call_operand.vmem [shape: f32[32,2], index: 2, kind: input, shape index: {}]
  %s3 = inlined_call_operand.vmem [shape: f32[32,1], index: 3, kind: input, shape index: {}]
  %s4 = inlined_call_operand.vmem [shape: f32[32,4], index: 4, kind: input, shape index: {}]
  %s5 = inlined_call_operand.vmem [shape: f32[32,1], index: 5, kind: input, shape index: {}]
  %s6 = inlined_call_operand.<no memory space> [shape: f32[1,1], index: 6, kind: input, shape index: {}]
  %s7 = inlined_call_operand.hbm [shape: f32[2,256], index: 7, kind: output, shape index: {}]
  %s8 = sld [smem:[#allocation0]]
  $region38: #{tpu_custom_call.1} parent=0
    _
  %s10 = ssub.s32 1, %s8
  %s11 = scalar_select 0, %s10, %s8
  %12 = sst [smem:[#allocation2]] %s6
  $region1: #{tpu_custom_call.1} parent=0
    #allocation3 [shape = 'u8[2048]{0}', space=vmem, size = 0x800, scoped, tag = 'output window, operand 0, single buffered']
    #allocation4 [shape = 's32[1]{0}', space=sflag, size = 0x4, scoped, tag = 'scoped memory for tpu_custom_call.1']
    %13 = vsyncpa [#allocation4], 0
    // Predicated region
    $region2: #{tpu_custom_call.1} parent=1 // pred_check
      _
    $region3: #{tpu_custom_call.1} parent=1 // pred_check_branch
      %15 = sbr.rel (0) target = $region5
    $region4: #{tpu_custom_call.1} parent=1 // pred_region
      _
    $region5: #{tpu_custom_call.1} parent=1 // pred_fallthru
      _
    // Predicated region
    $region6: #{tpu_custom_call.1} parent=1 // pred_check
      _
    $region7: #{tpu_custom_call.1} parent=1 // pred_check_branch
      %17 = sbr.rel (0) target = $region9
    $region8: #{tpu_custom_call.1} parent=1 // pred_region
      _
    $region9: #{tpu_custom_call.1} parent=1 // pred_fallthru
      _
    // Predicated region
    $region10: #{tpu_custom_call.1} parent=1 // pred_check
      _
    $region11: #{tpu_custom_call.1} parent=1 // pred_check_branch
      %19 = sbr.rel (0) target = $region13
    $region12: #{tpu_custom_call.1} parent=1 // pred_region
      _
    $region13: #{tpu_custom_call.1} parent=1 // pred_fallthru
      _
    // Predicated region
    $region14: #{tpu_custom_call.1} parent=1 // pred_check
      _
    $region15: #{tpu_custom_call.1} parent=1 // pred_check_branch
      %21 = sbr.rel (0) target = $region17
    $region16: #{tpu_custom_call.1} parent=1 // pred_region
      _
    $region17: #{tpu_custom_call.1} parent=1 // pred_fallthru
      _
    // Predicated region
    $region18: #{tpu_custom_call.1} parent=1 // pred_check
      _
    $region19: #{tpu_custom_call.1} parent=1 // pred_check_branch
      %23 = sbr.rel (0) target = $region21
    $region20: #{tpu_custom_call.1} parent=1 // pred_region
      _
    $region21: #{tpu_custom_call.1} parent=1 // pred_fallthru
      _
    // Predicated region
    $region22: #{tpu_custom_call.1} parent=1 // pred_check
      _
    $region23: #{tpu_custom_call.1} parent=1 // pred_check_branch
      %25 = sbr.rel (0) target = $region25
    $region24: #{tpu_custom_call.1} parent=1 // pred_region
      _
    $region25: #{tpu_custom_call.1} parent=1 // pred_fallthru
      _
    // Predicated region
    $region26: #{tpu_custom_call.1} parent=1 // pred_check
      _
    $region27: #{tpu_custom_call.1} parent=1 // pred_check_branch
      %27 = sbr.rel (0) target = $region29
    $region28: #{tpu_custom_call.1} parent=1 // pred_region
      _
    $region29: #{tpu_custom_call.1} parent=1 // pred_fallthru
      _
    %v28 = vld [vmem:[%s0] sm:$0xf]
    %v29 = vld [vmem:[%s2] sm:$0xff]
    %v30 = vld [vmem:[%s2 + $0x8] sm:$0xff]
    %v31 = vld [vmem:[%s2 + $0x10] sm:$0xff]
    %v32 = vld [vmem:[%s2 + $0x18] sm:$0xff]
    %34 = vset.pattern.permute.xlu0 0
    %35 = vperm.xlu0 %34, %v29
    %v36 = vpop.permute.xlu0 %35
    %39 = vset.pattern.permute.xlu0 0
    %40 = vperm.xlu0 %39, %v30
    %v41 = vpop.permute.xlu0 %40
    %44 = vset.pattern.permute.xlu0 0
    %45 = vperm.xlu0 %44, %v31
    %v46 = vpop.permute.xlu0 %45
    %49 = vset.pattern.permute.xlu0 0
    %50 = vperm.xlu0 %49, %v32
    %v51 = vpop.permute.xlu0 %50
    %v54 = vperm.slane %v28, 0
    %v55 = vperm.slane %v28, 2
    %v58 = vperm.slane %v54, 0
    %v59 = vperm.slane %v55, 0
    %v60 = vmul.f32 %v36, %v58
    %v61 = vmul.f32 %v36, %v59
    %v62 = vmul.f32 %v41, %v58
    %v63 = vmul.f32 %v41, %v59
    %v64 = vmul.f32 %v46, %v58
    %v65 = vmul.f32 %v46, %v59
    %v66 = vmul.f32 %v51, %v58
    %v67 = vmul.f32 %v51, %v59
    %68 = vset.pattern.permute.xlu0 1
    %69 = vperm.xlu0 %68, %v29
    %v70 = vpop.permute.xlu0 %69
    %72 = vset.pattern.permute.xlu0 1
    %73 = vperm.xlu0 %72, %v30
    %v74 = vpop.permute.xlu0 %73
    %76 = vset.pattern.permute.xlu0 1
    %77 = vperm.xlu0 %76, %v31
    %v78 = vpop.permute.xlu0 %77
    %80 = vset.pattern.permute.xlu0 1
    %81 = vperm.xlu0 %80, %v32
    %v82 = vpop.permute.xlu0 %81
    %v84 = vperm.slane %v28, 1
    %v85 = vperm.slane %v28, 3
    %v88 = vperm.slane %v84, 1
    %v89 = vperm.slane %v85, 1
    %v90 = vmul.f32 %v70, %v88
    %v91 = vmul.f32 %v70, %v89
    %v92 = vmul.f32 %v74, %v88
    %v93 = vmul.f32 %v74, %v89
    %v94 = vmul.f32 %v78, %v88
    %v95 = vmul.f32 %v78, %v89
    %v96 = vmul.f32 %v82, %v88
    %v97 = vmul.f32 %v82, %v89
    %v98 = vadd.f32 %v60, %v90
    %v99 = vadd.f32 %v61, %v91
    %v100 = vadd.f32 %v62, %v92
    %v101 = vadd.f32 %v63, %v93
    %v102 = vadd.f32 %v64, %v94
    %v103 = vadd.f32 %v65, %v95
    %v104 = vadd.f32 %v66, %v96
    %v105 = vadd.f32 %v67, %v97
    %v106 = vld [vmem:[%s1] sm:$0xf]
    %v107 = vld [vmem:[%s4] sm:$0xff]
    %v108 = vld [vmem:[%s4 + $0x8] sm:$0xff]
    %v109 = vld [vmem:[%s4 + $0x10] sm:$0xff]
    %v110 = vld [vmem:[%s4 + $0x18] sm:$0xff]
    %v111 = vld [vmem:[%s3] sm:$0xff]
    %v112 = vld [vmem:[%s3 + $0x8] sm:$0xff]
    %v113 = vld [vmem:[%s3 + $0x10] sm:$0xff]
    %v114 = vld [vmem:[%s3 + $0x18] sm:$0xff]
    %116 = vset.pattern.permute.xlu0 0
    %117 = vperm.xlu0 %116, %v111
    %v118 = vpop.permute.xlu0 %117
    %121 = vset.pattern.permute.xlu0 0
    %122 = vperm.xlu0 %121, %v112
    %v123 = vpop.permute.xlu0 %122
    %126 = vset.pattern.permute.xlu0 0
    %127 = vperm.xlu0 %126, %v113
    %v128 = vpop.permute.xlu0 %127
    %131 = vset.pattern.permute.xlu0 0
    %132 = vperm.xlu0 %131, %v114
    %v133 = vpop.permute.xlu0 %132
    %136 = vset.pattern.permute.xlu0 0
    %137 = vperm.xlu0 %136, %v107
    %v138 = vpop.permute.xlu0 %137
    %141 = vset.pattern.permute.xlu0 0
    %142 = vperm.xlu0 %141, %v108
    %v143 = vpop.permute.xlu0 %142
    %146 = vset.pattern.permute.xlu0 0
    %147 = vperm.xlu0 %146, %v109
    %v148 = vpop.permute.xlu0 %147
    %151 = vset.pattern.permute.xlu0 0
    %152 = vperm.xlu0 %151, %v110
    %v153 = vpop.permute.xlu0 %152
    %v155 = vperm.slane %v106, 0
    %v156 = vmul.f32 %v138, %v155
    %v157 = vmul.f32 %v143, %v155
    %v158 = vmul.f32 %v148, %v155
    %v159 = vmul.f32 %v153, %v155
    %v160 = vadd.f32 %v118, %v156
    %v161 = vadd.f32 %v123, %v157
    %v162 = vadd.f32 %v128, %v158
    %v163 = vadd.f32 %v133, %v159
    %164 = vset.pattern.permute.xlu0 1
    %165 = vperm.xlu0 %164, %v107
    %v166 = vpop.permute.xlu0 %165
    %168 = vset.pattern.permute.xlu0 1
    %169 = vperm.xlu0 %168, %v108
    %v170 = vpop.permute.xlu0 %169
    %172 = vset.pattern.permute.xlu0 1
    %173 = vperm.xlu0 %172, %v109
    %v174 = vpop.permute.xlu0 %173
    %176 = vset.pattern.permute.xlu0 1
    %177 = vperm.xlu0 %176, %v110
    %v178 = vpop.permute.xlu0 %177
    %v180 = vperm.slane %v106, 1
    %v181 = vmul.f32 %v166, %v180
    %v182 = vmul.f32 %v170, %v180
    %v183 = vmul.f32 %v174, %v180
    %v184 = vmul.f32 %v178, %v180
    %v185 = vadd.f32 %v160, %v181
    %v186 = vadd.f32 %v161, %v182
    %v187 = vadd.f32 %v162, %v183
    %v188 = vadd.f32 %v163, %v184
    %189 = vset.pattern.permute.xlu0 2
    %190 = vperm.xlu0 %189, %v107
    %v191 = vpop.permute.xlu0 %190
    %193 = vset.pattern.permute.xlu0 2
    %194 = vperm.xlu0 %193, %v108
    %v195 = vpop.permute.xlu0 %194
    %197 = vset.pattern.permute.xlu0 2
    %198 = vperm.xlu0 %197, %v109
    %v199 = vpop.permute.xlu0 %198
    %201 = vset.pattern.permute.xlu0 2
    %202 = vperm.xlu0 %201, %v110
    %v203 = vpop.permute.xlu0 %202
    %v205 = vperm.slane %v106, 2
    %v206 = vmul.f32 %v191, %v205
    %v207 = vmul.f32 %v195, %v205
    %v208 = vmul.f32 %v199, %v205
    %v209 = vmul.f32 %v203, %v205
    %v210 = vadd.f32 %v185, %v206
    %v211 = vadd.f32 %v186, %v207
    %v212 = vadd.f32 %v187, %v208
    %v213 = vadd.f32 %v188, %v209
    %214 = vset.pattern.permute.xlu0 3
    %215 = vperm.xlu0 %214, %v107
    %v216 = vpop.permute.xlu0 %215
    %218 = vset.pattern.permute.xlu0 3
    %219 = vperm.xlu0 %218, %v108
    %v220 = vpop.permute.xlu0 %219
    %222 = vset.pattern.permute.xlu0 3
    %223 = vperm.xlu0 %222, %v109
    %v224 = vpop.permute.xlu0 %223
    %226 = vset.pattern.permute.xlu0 3
    %227 = vperm.xlu0 %226, %v110
    %v228 = vpop.permute.xlu0 %227
    %v230 = vperm.slane %v106, 3
    %v231 = vmul.f32 %v216, %v230
    %v232 = vmul.f32 %v220, %v230
    %v233 = vmul.f32 %v224, %v230
    %v234 = vmul.f32 %v228, %v230
    %v235 = vadd.f32 %v210, %v231
    %v236 = vadd.f32 %v211, %v232
    %v237 = vadd.f32 %v212, %v233
    %v238 = vadd.f32 %v213, %v234
    %v239 = vld [vmem:[%s5] sm:$0xff]
    %v240 = vld [vmem:[%s5 + $0x8] sm:$0xff]
    %v241 = vld [vmem:[%s5 + $0x10] sm:$0xff]
    %v242 = vld [vmem:[%s5 + $0x18] sm:$0xff]
    %244 = vset.pattern.permute.xlu0 0
    %245 = vperm.xlu0 %244, %v239
    %v246 = vpop.permute.xlu0 %245
    %249 = vset.pattern.permute.xlu0 0
    %250 = vperm.xlu0 %249, %v240
    %v251 = vpop.permute.xlu0 %250
    %254 = vset.pattern.permute.xlu0 0
    %255 = vperm.xlu0 %254, %v241
    %v256 = vpop.permute.xlu0 %255
    %259 = vset.pattern.permute.xlu0 0
    %260 = vperm.xlu0 %259, %v242
    %v261 = vpop.permute.xlu0 %260
    %s263 = sld [smem:[#allocation2]]
    %265 = vset.pattern.permute.xlu0 0
    %266 = vperm.xlu0 %265, %v235
    %v267 = vpop.permute.xlu0 %266
    %270 = vset.pattern.permute.xlu0 0
    %271 = vperm.xlu0 %270, %v236
    %v272 = vpop.permute.xlu0 %271
    %275 = vset.pattern.permute.xlu0 0
    %276 = vperm.xlu0 %275, %v237
    %v277 = vpop.permute.xlu0 %276
    %280 = vset.pattern.permute.xlu0 0
    %281 = vperm.xlu0 %280, %v238
    %v282 = vpop.permute.xlu0 %281
    %v284 = vadd.f32 %v98, %v267
    %v285 = vadd.f32 %v99, %v267
    %v286 = vadd.f32 %v100, %v272
    %v287 = vadd.f32 %v101, %v272
    %v288 = vadd.f32 %v102, %v277
    %v289 = vadd.f32 %v103, %v277
    %v290 = vadd.f32 %v104, %v282
    %v291 = vadd.f32 %v105, %v282
    %v292 = vmul.f32 %v284, 0.01
    %v293 = vmul.f32 %v285, 0.01
    %v294 = vmul.f32 %v286, 0.01
    %v295 = vmul.f32 %v287, 0.01
    %v296 = vmul.f32 %v288, 0.01
    %v297 = vmul.f32 %v289, 0.01
    %v298 = vmul.f32 %v290, 0.01
    %v299 = vmul.f32 %v291, 0.01
    %v300 = vmax.f32 %v284, %v292
    %v301 = vmax.f32 %v285, %v293
    %v302 = vmax.f32 %v286, %v294
    %v303 = vmax.f32 %v287, %v295
    %v304 = vmax.f32 %v288, %v296
    %v305 = vmax.f32 %v289, %v297
    %v306 = vmax.f32 %v290, %v298
    %v307 = vmax.f32 %v291, %v299
    %v308 = vmul.f32 %v300, %v246
    %v309 = vmul.f32 %v301, %v246
    %v310 = vmul.f32 %v302, %v251
    %v311 = vmul.f32 %v303, %v251
    %v312 = vmul.f32 %v304, %v256
    %v313 = vmul.f32 %v305, %v256
    %v314 = vmul.f32 %v306, %v261
    %v315 = vmul.f32 %v307, %v261
    %v316 = vadd.f32 %v308, %v310
    %v317 = vadd.f32 %v316, %v312
    %v318 = vadd.f32 %v317, %v314
    %v319 = vrot.slane %v318, 4
    %v320 = vadd.f32 %v318, %v319
    %v321 = vrot.slane %v320, 2
    %v322 = vadd.f32 %v320, %v321
    %v323 = vrot.slane %v322, 1
    %v324 = vadd.f32 %v322, %v323
    %v325 = vadd.f32 %v309, %v311
    %v326 = vadd.f32 %v325, %v313
    %v327 = vadd.f32 %v326, %v315
    %v328 = vrot.slane %v327, 4
    %v329 = vadd.f32 %v327, %v328
    %v330 = vrot.slane %v329, 2
    %v331 = vadd.f32 %v329, %v330
    %v332 = vrot.slane %v331, 1
    %v333 = vadd.f32 %v331, %v332
    %v334 = vstv %s263
    %v335 = vadd.f32 %v324, %v334
    %v336 = vadd.f32 %v333, %v334
    %v337 = vsub.f32 0.0, %v335
    %v338 = vsub.f32 0.0, %v336
    %v339 = vmul.f32 %v337, 1.442695
    %v340 = vpow.pop %v339
    %v341 = vmul.f32 %v338, 1.442695
    %v342 = vpow.pop %v341
    %v343 = vadd.f32 %v340, 1.0
    %v344 = vadd.f32 %v342, 1.0
    %v345 = vrcp.pop %v343
    %v346 = vmul.f32 %v343, %v345
    %v347 = vsub.f32 1.0, %v346
    %v348 = vmul.f32 %v345, %v347
    %v349 = vadd.f32 %v345, %v348
    %vm350 = vweird.f32 %v343
    %vm351 = vweird.f32 %v345
    %vm352 = vmor %vm350, %vm351
    %v353 = vsel %vm352, %v345, %v349
    %v354 = vand.u32 2147483647, %v343
    %vm355 = vcmp.eq.f32.partialorder %v354, 8.507059e+37
    %v356 = vand.u32 %v343, 2147483648
    %v357 = vor.u32 1.1754944e-38, %v356
    %v358 = vsel %vm355, %v357, %v353
    %v359 = vrcp.pop %v344
    %v360 = vmul.f32 %v344, %v359
    %v361 = vsub.f32 1.0, %v360
    %v362 = vmul.f32 %v359, %v361
    %v363 = vadd.f32 %v359, %v362
    %vm364 = vweird.f32 %v344
    %vm365 = vweird.f32 %v359
    %vm366 = vmor %vm364, %vm365
    %v367 = vsel %vm366, %v359, %v363
    %v368 = vand.u32 2147483647, %v344
    %vm369 = vcmp.eq.f32.partialorder %v368, 8.507059e+37
    %v370 = vand.u32 %v344, 2147483648
    %v371 = vor.u32 1.1754944e-38, %v370
    %v372 = vsel %vm369, %v371, %v367
    %373 = vset.pattern.permute.xlu0 1
    %374 = vperm.xlu0 %373, %v235
    %v375 = vpop.permute.xlu0 %374
    %377 = vset.pattern.permute.xlu0 1
    %378 = vperm.xlu0 %377, %v236
    %v379 = vpop.permute.xlu0 %378
    %381 = vset.pattern.permute.xlu0 1
    %382 = vperm.xlu0 %381, %v237
    %v383 = vpop.permute.xlu0 %382
    %385 = vset.pattern.permute.xlu0 1
    %386 = vperm.xlu0 %385, %v238
    %v387 = vpop.permute.xlu0 %386
    %v389 = vadd.f32 %v98, %v375
    %v390 = vadd.f32 %v99, %v375
    %v391 = vadd.f32 %v100, %v379
    %v392 = vadd.f32 %v101, %v379
    %v393 = vadd.f32 %v102, %v383
    %v394 = vadd.f32 %v103, %v383
    %v395 = vadd.f32 %v104, %v387
    %v396 = vadd.f32 %v105, %v387
    %v397 = vmul.f32 %v389, 0.01
    %v398 = vmul.f32 %v390, 0.01
    %v399 = vmul.f32 %v391, 0.01
    %v400 = vmul.f32 %v392, 0.01
    %v401 = vmul.f32 %v393, 0.01
    %v402 = vmul.f32 %v394, 0.01
    %v403 = vmul.f32 %v395, 0.01
    %v404 = vmul.f32 %v396, 0.01
    %v405 = vmax.f32 %v389, %v397
    %v406 = vmax.f32 %v390, %v398
    %v407 = vmax.f32 %v391, %v399
    %v408 = vmax.f32 %v392, %v400
    %v409 = vmax.f32 %v393, %v401
    %v410 = vmax.f32 %v394, %v402
    %v411 = vmax.f32 %v395, %v403
    %v412 = vmax.f32 %v396, %v404
    %v413 = vmul.f32 %v405, %v246
    %v414 = vmul.f32 %v406, %v246
    %v415 = vmul.f32 %v407, %v251
    %v416 = vmul.f32 %v408, %v251
    %v417 = vmul.f32 %v409, %v256
    %v418 = vmul.f32 %v410, %v256
    %v419 = vmul.f32 %v411, %v261
    %v420 = vmul.f32 %v412, %v261
    %v421 = vadd.f32 %v413, %v415
    %v422 = vadd.f32 %v421, %v417
    %v423 = vadd.f32 %v422, %v419
    %v424 = vrot.slane %v423, 4
    %v425 = vadd.f32 %v423, %v424
    %v426 = vrot.slane %v425, 2
    %v427 = vadd.f32 %v425, %v426
    %v428 = vrot.slane %v427, 1
    %v429 = vadd.f32 %v427, %v428
    %v430 = vadd.f32 %v414, %v416
    %v431 = vadd.f32 %v430, %v418
    %v432 = vadd.f32 %v431, %v420
    %v433 = vrot.slane %v432, 4
    %v434 = vadd.f32 %v432, %v433
    %v435 = vrot.slane %v434, 2
    %v436 = vadd.f32 %v434, %v435
    %v437 = vrot.slane %v436, 1
    %v438 = vadd.f32 %v436, %v437
    %v439 = vadd.f32 %v429, %v334
    %v440 = vadd.f32 %v438, %v334
    %v441 = vsub.f32 0.0, %v439
    %v442 = vsub.f32 0.0, %v440
    %v443 = vmul.f32 %v441, 1.442695
    %v444 = vpow.pop %v443
    %v445 = vmul.f32 %v442, 1.442695
    %v446 = vpow.pop %v445
    %v447 = vadd.f32 %v444, 1.0
    %v448 = vadd.f32 %v446, 1.0
    %v449 = vrcp.pop %v447
    %v450 = vmul.f32 %v447, %v449
    %v451 = vsub.f32 1.0, %v450
    %v452 = vmul.f32 %v449, %v451
    %v453 = vadd.f32 %v449, %v452
    %vm454 = vweird.f32 %v447
    %vm455 = vweird.f32 %v449
    %vm456 = vmor %vm454, %vm455
    %v457 = vsel %vm456, %v449, %v453
    %v458 = vand.u32 2147483647, %v447
    %vm459 = vcmp.eq.f32.partialorder %v458, 8.507059e+37
    %v460 = vand.u32 %v447, 2147483648
    %v461 = vor.u32 1.1754944e-38, %v460
    %v462 = vsel %vm459, %v461, %v457
    %v463 = vrcp.pop %v448
    %v464 = vmul.f32 %v448, %v463
    %v465 = vsub.f32 1.0, %v464
    %v466 = vmul.f32 %v463, %v465
    %v467 = vadd.f32 %v463, %v466
    %vm468 = vweird.f32 %v448
    %vm469 = vweird.f32 %v463
    %vm470 = vmor %vm468, %vm469
    %v471 = vsel %vm470, %v463, %v467
    %v472 = vand.u32 2147483647, %v448
    %vm473 = vcmp.eq.f32.partialorder %v472, 8.507059e+37
    %v474 = vand.u32 %v448, 2147483648
    %v475 = vor.u32 1.1754944e-38, %v474
    %v476 = vsel %vm473, %v475, %v471
    %vm477 = vcmask 1040384
    %v478 = vsel %vm477, %v358, %v462
    %v479 = vsel %vm477, %v372, %v476
    %v482 = vrot.slane %v479, 6
    %vm483 = vcmask 1041408
    %v484 = vsel %vm483, %v478, %v482
    %486 = vst [vmem:[#allocation3] sm:$0xf] %v484
    // Predicated region
    $region30: #{tpu_custom_call.1} parent=1 // pred_check
      _
    $region31: #{tpu_custom_call.1} parent=1 // pred_check_branch
      %488 = sbr.rel (0) target = $region33
    $region32: #{tpu_custom_call.1} parent=1 // pred_region
      %490 = vsyncadd [#allocation4], 0
      %s492 = sshll.u32 [#allocation3], 4
      %s493 = int_to_ptr.vmem [resolvable:$true] %s492
      %s494 = sshll.u32 %s7, 4
      %s495 = int_to_ptr.hbm [resolvable:$true] %s494
      %497 = dma.vmem_to_hbm [thread:$0]  %s493, 64, %s495, [#allocation4]
    $region33: #{tpu_custom_call.1} parent=1 // pred_fallthru
      _
    // Predicated region
    $region34: #{tpu_custom_call.1} parent=1 // pred_check
      _
    $region35: #{tpu_custom_call.1} parent=1 // pred_check_branch
      %499 = sbr.rel (0) target = $region37
    $region36: #{tpu_custom_call.1} parent=1 // pred_region
      %501 = dma.done [#allocation4], 64
    $region37: #{tpu_custom_call.1} parent=1 // pred_fallthru
      _
    %502 = vsyncpa [#allocation4], 1

</llo_original>
